<compile_context>
chip_gen: v7x
topology: tpu7x:2x2x1
jax: 0.10.0
libtpu: 0.0.40
codegen_flags: <defaults>
</compile_context>

<pallas_src>
import functools

import jax
import jax.numpy as jnp
from jax import lax
from jax.experimental import pallas as pl
from jax.experimental.pallas import tpu as pltpu

LOG_SIG_MAX = 2.0
LOG_SIG_MIN = -20.0
HIDDEN = 256


def _gaussian_policy_kernel(
    state_ref,
    w1_ref, b1_ref,
    w2_ref, b2_ref,
    wh_ref, bh_ref,          # fused heads: lanes [0:A]=mean, [ls_off:ls_off+A]=log_std
    out_ref,
    *, ls_off,
):
    x = state_ref[...]

    # linear1 + relu (f32 accumulate, bf16 back into the MXU)
    h1 = jnp.dot(x, w1_ref[...], preferred_element_type=jnp.float32) + b1_ref[...]
    h1 = jnp.maximum(h1, 0.0).astype(w2_ref.dtype)

    # linear2 + relu
    h2 = jnp.dot(h1, w2_ref[...], preferred_element_type=jnp.float32) + b2_ref[...]
    h2 = jnp.maximum(h2, 0.0).astype(wh_ref.dtype)

    # fused mean / log_std heads: one MXU pass, clamp only the log_std lanes
    head = jnp.dot(h2, wh_ref[...], preferred_element_type=jnp.float32) + bh_ref[...]
    lane = lax.broadcasted_iota(jnp.int32, head.shape, dimension=1)
    clamped = jnp.clip(head, LOG_SIG_MIN, LOG_SIG_MAX)
    head = jnp.where(lane >= ls_off, clamped, head)

    out_ref[...] = head.astype(out_ref.dtype)


def _round_up(x, m):
    return ((x + m - 1) // m) * m


def _head_layout(num_actions):
    """Packed-head layout: (out_width, ls_off)."""
    if 2 * num_actions <= 128:
        return 128, num_actions
    ap = _round_up(num_actions, 128)
    return 2 * ap, ap


def _pick_tile(batch, block_batch):
    """Batch tile: sublane-aligned for tiny batches, 128..512 rows otherwise."""
    if batch < 128:
        return _round_up(max(batch, 1), 8)
    b128 = _round_up(batch, 128)
    for cand in (512, 384, 256):
        if cand <= block_batch and b128 % cand == 0 and b128 // cand >= 2:
            return cand
    return 128


def prepare_params(params, compute_dtype=jnp.bfloat16):
    """One-time weight prep: bf16 cast + fused/padded head. Call once, reuse."""
    w1, b1, w2, b2, wm, bm, ws, bs = params
    num_actions = wm.shape[1]
    out_width, ls_off = _head_layout(num_actions)

    wh = jnp.zeros((HIDDEN, out_width), jnp.float32)
    wh = wh.at[:, :num_actions].set(wm)
    wh = wh.at[:, ls_off:ls_off + num_actions].set(ws)
    bh = jnp.zeros((1, out_width), jnp.float32)
    bh = bh.at[:, :num_actions].set(bm)
    bh = bh.at[:, ls_off:ls_off + num_actions].set(bs)

    return (w1.astype(compute_dtype), b1.astype(jnp.float32),
            w2.astype(compute_dtype), b2.astype(jnp.float32),
            wh.astype(compute_dtype), bh.astype(jnp.float32))


@functools.partial(jax.jit, static_argnames=("num_actions", "block_batch"))
def gaussian_policy_forward(state, prepped_params, *, num_actions, block_batch=512):
    """Runs GaussianPolicy.forward. Returns (mean, log_std)."""
    w1, b1, w2, b2, wh, bh = prepped_params
    batch, num_inputs = state.shape
    out_width = wh.shape[1]
    _, ls_off = _head_layout(num_actions)

    tb = _pick_tile(batch, block_batch)
    b_pad = _round_up(batch, tb)

    xs = state.astype(w1.dtype)
    if b_pad != batch:                       # skip the pad when not needed
        xs = jnp.pad(xs, ((0, b_pad - batch), (0, 0)))

    grid = (b_pad // tb,)
    # Constant index_map -> weights/biases stay VMEM-resident across the grid.
    const = lambda arr: pl.BlockSpec(arr.shape, lambda i: (0, 0))

    out = pl.pallas_call(
        functools.partial(_gaussian_policy_kernel, ls_off=ls_off),
        out_shape=jax.ShapeDtypeStruct((b_pad, out_width), jnp.bfloat16),
        grid_spec=pltpu.PrefetchScalarGridSpec(
            num_scalar_prefetch=0,
            grid=grid,
            in_specs=[
                pl.BlockSpec((tb, num_inputs), lambda i: (i, 0)),
                const(w1), const(b1),
                const(w2), const(b2),
                const(wh), const(bh),
            ],
            out_specs=pl.BlockSpec((tb, out_width), lambda i: (i, 0)),
        ),
        compiler_params=pltpu.CompilerParams(
            dimension_semantics=("parallel",),
            vmem_limit_bytes=16 << 20,
        ),
    )(xs, w1, b1, w2, b2, wh, bh)

    mean = out[:batch, :num_actions].astype(jnp.float32)
    log_std = out[:batch, ls_off:ls_off + num_actions].astype(jnp.float32)
    return mean, log_std


def _xavier_uniform(key, fan_in, fan_out, dtype=jnp.float32):
    # torch.nn.init.xavier_uniform_ gain=1: U(-a, a), a = sqrt(6/(fan_in+fan_out))
    limit = (6.0 / (fan_in + fan_out)) ** 0.5
    # stored transposed: (fan_in, fan_out) so kernel computes x @ W
    return jax.random.uniform(key, (fan_in, fan_out), dtype=dtype,
                              minval=-limit, maxval=limit)


def init_params(key, num_inputs, num_actions):
    k1, k2, k3, k4 = jax.random.split(key, 4)
    w1 = _xavier_uniform(k1, num_inputs, HIDDEN)
    b1 = jnp.zeros((1, HIDDEN), jnp.float32)
    w2 = _xavier_uniform(k2, HIDDEN, HIDDEN)
    b2 = jnp.zeros((1, HIDDEN), jnp.float32)
    wm = _xavier_uniform(k3, HIDDEN, num_actions)
    bm = jnp.zeros((1, num_actions), jnp.float32)
    ws = _xavier_uniform(k4, HIDDEN, num_actions)
    bs = jnp.zeros((1, num_actions), jnp.float32)
    return (w1, b1, w2, b2, wm, bm, ws, bs)


def _reference_forward(state, params):
    w1, b1, w2, b2, wm, bm, ws, bs = params
    h1 = jnp.maximum(state @ w1 + b1, 0.0)
    h2 = jnp.maximum(h1 @ w2 + b2, 0.0)
    mean = h2 @ wm + bm
    log_std = jnp.clip(h2 @ ws + bs, LOG_SIG_MIN, LOG_SIG_MAX)
    return mean, log_std


# TODO(synk): sample()/select_action() (Normal rsample + tanh squash + log_prob)
# are not part of forward(); they remain plain-JAX / host-side if needed.

if __name__ == "__main__":
    batch = 8
    num_inputs = 32
    num_actions = 8

    key = jax.random.PRNGKey(0)
    k_state, k_params = jax.random.split(key)

    state = jax.random.normal(k_state, (batch, num_inputs), jnp.float32)
    params = init_params(k_params, num_inputs, num_actions)
    prepped = prepare_params(params)      # one-time bf16 cast + head fuse/pad

    mean, log_std = gaussian_policy_forward(state, prepped, num_actions=num_actions)
    jax.block_until_ready((mean, log_std))

    ref_mean, ref_log_std = _reference_forward(state, params)
    # bf16 MXU operands / bf16 output with f32 accumulation -> loose tolerance.
    assert mean.shape == (batch, num_actions)
    assert log_std.shape == (batch, num_actions)
    assert jnp.allclose(mean, ref_mean, atol=5e-2, rtol=5e-2)
    assert jnp.allclose(log_std, ref_log_std, atol=5e-2, rtol=5e-2)
    assert bool(jnp.all(log_std <= LOG_SIG_MAX)) and bool(jnp.all(log_std >= LOG_SIG_MIN))

    print("KERNEL_OK")
</pallas_src>

<mosaic_0001>
module attributes {stable_mosaic.version = 11 : i64} {
  func.func @_gaussian_policy_kernel(%arg0: i32, %arg1: memref<8x32xbf16, #tpu.memory_space<vmem>>, %arg2: memref<32x256xbf16, #tpu.memory_space<vmem>>, %arg3: memref<1x256xf32, #tpu.memory_space<vmem>>, %arg4: memref<256x256xbf16, #tpu.memory_space<vmem>>, %arg5: memref<1x256xf32, #tpu.memory_space<vmem>>, %arg6: memref<256x128xbf16, #tpu.memory_space<vmem>>, %arg7: memref<1x128xf32, #tpu.memory_space<vmem>>, %arg8: memref<8x128xbf16, #tpu.memory_space<vmem>>) attributes {dimension_semantics = [#tpu.dimension_semantics<parallel>], iteration_bounds = array<i64: 1>, scalar_prefetch = 0 : i64, scratch_operands = 0 : i64, tpu.core_type = #tpu.core_type<tc>, window_params = [{transform_indices = @transform_0, window_bounds = array<i64: 8, 32>}, {pipeline_mode = #tpu.pipeline_mode<synchronous>, transform_indices = @transform_1, window_bounds = array<i64: 32, 256>}, {pipeline_mode = #tpu.pipeline_mode<synchronous>, transform_indices = @transform_2, window_bounds = array<i64: 1, 256>}, {pipeline_mode = #tpu.pipeline_mode<synchronous>, transform_indices = @transform_3, window_bounds = array<i64: 256, 256>}, {pipeline_mode = #tpu.pipeline_mode<synchronous>, transform_indices = @transform_4, window_bounds = array<i64: 1, 256>}, {pipeline_mode = #tpu.pipeline_mode<synchronous>, transform_indices = @transform_5, window_bounds = array<i64: 256, 128>}, {pipeline_mode = #tpu.pipeline_mode<synchronous>, transform_indices = @transform_6, window_bounds = array<i64: 1, 128>}, {transform_indices = @transform_7, window_bounds = array<i64: 8, 128>}]} {
    %c0 = arith.constant 0 : index
    %c0_0 = arith.constant 0 : index
    %0 = vector.load %arg1[%c0, %c0_0] : memref<8x32xbf16, #tpu.memory_space<vmem>>, vector<8x32xbf16>
    %c0_1 = arith.constant 0 : index
    %c0_2 = arith.constant 0 : index
    %1 = vector.load %arg2[%c0_1, %c0_2] : memref<32x256xbf16, #tpu.memory_space<vmem>>, vector<32x256xbf16>
    %cst = arith.constant dense<0.000000e+00> : vector<8x256xf32>
    %2 = tpu.matmul %0, %1, %cst {dimension_numbers = #tpu.dot_dimension_numbers<[1], [0], [0], [1], [0, 0, 1, 1], [], []>} : vector<8x32xbf16>, vector<32x256xbf16>, vector<8x256xf32> -> vector<8x256xf32>
    %c0_3 = arith.constant 0 : index
    %c0_4 = arith.constant 0 : index
    %3 = vector.load %arg3[%c0_3, %c0_4] : memref<1x256xf32, #tpu.memory_space<vmem>>, vector<1x256xf32>
    %4 = vector.broadcast %3 : vector<1x256xf32> to vector<8x256xf32>
    %5 = arith.addf %2, %4 : vector<8x256xf32>
    %cst_5 = arith.constant 0.000000e+00 : f32
    %6 = vector.broadcast %cst_5 : f32 to vector<8x256xf32>
    %7 = arith.maximumf %5, %6 : vector<8x256xf32>
    %8 = arith.truncf %7 : vector<8x256xf32> to vector<8x256xbf16>
    %c0_6 = arith.constant 0 : index
    %c0_7 = arith.constant 0 : index
    %9 = vector.load %arg4[%c0_6, %c0_7] : memref<256x256xbf16, #tpu.memory_space<vmem>>, vector<256x256xbf16>
    %cst_8 = arith.constant dense<0.000000e+00> : vector<8x256xf32>
    %10 = tpu.matmul %8, %9, %cst_8 {dimension_numbers = #tpu.dot_dimension_numbers<[1], [0], [0], [1], [0, 0, 1, 1], [], []>} : vector<8x256xbf16>, vector<256x256xbf16>, vector<8x256xf32> -> vector<8x256xf32>
    %c0_9 = arith.constant 0 : index
    %c0_10 = arith.constant 0 : index
    %11 = vector.load %arg5[%c0_9, %c0_10] : memref<1x256xf32, #tpu.memory_space<vmem>>, vector<1x256xf32>
    %12 = vector.broadcast %11 : vector<1x256xf32> to vector<8x256xf32>
    %13 = arith.addf %10, %12 : vector<8x256xf32>
    %cst_11 = arith.constant 0.000000e+00 : f32
    %14 = vector.broadcast %cst_11 : f32 to vector<8x256xf32>
    %15 = arith.maximumf %13, %14 : vector<8x256xf32>
    %16 = arith.truncf %15 : vector<8x256xf32> to vector<8x256xbf16>
    %c0_12 = arith.constant 0 : index
    %c0_13 = arith.constant 0 : index
    %17 = vector.load %arg6[%c0_12, %c0_13] : memref<256x128xbf16, #tpu.memory_space<vmem>>, vector<256x128xbf16>
    %cst_14 = arith.constant dense<0.000000e+00> : vector<8x128xf32>
    %18 = tpu.matmul %16, %17, %cst_14 {dimension_numbers = #tpu.dot_dimension_numbers<[1], [0], [0], [1], [0, 0, 1, 1], [], []>} : vector<8x256xbf16>, vector<256x128xbf16>, vector<8x128xf32> -> vector<8x128xf32>
    %c0_15 = arith.constant 0 : index
    %c0_16 = arith.constant 0 : index
    %19 = vector.load %arg7[%c0_15, %c0_16] : memref<1x128xf32, #tpu.memory_space<vmem>>, vector<1x128xf32>
    %20 = vector.broadcast %19 : vector<1x128xf32> to vector<8x128xf32>
    %21 = arith.addf %18, %20 : vector<8x128xf32>
    %22 = tpu.iota {dimensions = array<i32: 1>} : vector<8x128xi32>
    %cst_17 = arith.constant -2.000000e+01 : f32
    %cst_18 = arith.constant 2.000000e+00 : f32
    %23 = vector.broadcast %cst_17 : f32 to vector<8x128xf32>
    %24 = arith.maximumf %23, %21 : vector<8x128xf32>
    %25 = vector.broadcast %cst_18 : f32 to vector<8x128xf32>
    %26 = arith.minimumf %25, %24 : vector<8x128xf32>
    %c8_i32 = arith.constant 8 : i32
    %27 = vector.broadcast %c8_i32 : i32 to vector<8x128xi32>
    %28 = arith.cmpi sge, %22, %27 : vector<8x128xi32>
    %29 = arith.select %28, %26, %21 : vector<8x128xi1>, vector<8x128xf32>
    %30 = arith.truncf %29 : vector<8x128xf32> to vector<8x128xbf16>
    %c0_19 = arith.constant 0 : index
    %c0_20 = arith.constant 0 : index
    %31 = vector.load %arg8[%c0_19, %c0_20] : memref<8x128xbf16, #tpu.memory_space<vmem>>, vector<8x128xbf16>
    tpu.vector_store %arg8[%c0_19, %c0_20], %30 {strides = array<i32>} : memref<8x128xbf16, #tpu.memory_space<vmem>>, vector<8x128xbf16>,
    return
  }
  func.func @transform_0(%arg0: i32) -> (i32, i32) {
    %c0_i32 = arith.constant 0 : i32
    %c0_i32_0 = arith.constant 0 : i32
    return %arg0, %c0_i32 : i32, i32
  }
  func.func @transform_1(%arg0: i32) -> (i32, i32) {
    %c0_i32 = arith.constant 0 : i32
    %c0_i32_0 = arith.constant 0 : i32
    %c0_i32_1 = arith.constant 0 : i32
    return %c0_i32, %c0_i32_0 : i32, i32
  }
  func.func @transform_2(%arg0: i32) -> (i32, i32) {
    %c0_i32 = arith.constant 0 : i32
    %c0_i32_0 = arith.constant 0 : i32
    %c0_i32_1 = arith.constant 0 : i32
    return %c0_i32, %c0_i32_0 : i32, i32
  }
  func.func @transform_3(%arg0: i32) -> (i32, i32) {
    %c0_i32 = arith.constant 0 : i32
    %c0_i32_0 = arith.constant 0 : i32
    %c0_i32_1 = arith.constant 0 : i32
    return %c0_i32, %c0_i32_0 : i32, i32
  }
  func.func @transform_4(%arg0: i32) -> (i32, i32) {
    %c0_i32 = arith.constant 0 : i32
    %c0_i32_0 = arith.constant 0 : i32
    %c0_i32_1 = arith.constant 0 : i32
    return %c0_i32, %c0_i32_0 : i32, i32
  }
  func.func @transform_5(%arg0: i32) -> (i32, i32) {
    %c0_i32 = arith.constant 0 : i32
    %c0_i32_0 = arith.constant 0 : i32
    %c0_i32_1 = arith.constant 0 : i32
    return %c0_i32, %c0_i32_0 : i32, i32
  }
  func.func @transform_6(%arg0: i32) -> (i32, i32) {
    %c0_i32 = arith.constant 0 : i32
    %c0_i32_0 = arith.constant 0 : i32
    %c0_i32_1 = arith.constant 0 : i32
    return %c0_i32, %c0_i32_0 : i32, i32
  }
  func.func @transform_7(%arg0: i32) -> (i32, i32) {
    %c0_i32 = arith.constant 0 : i32
    %c0_i32_0 = arith.constant 0 : i32
    return %arg0, %c0_i32 : i32, i32
  }
}

</mosaic_0001>

<llo_original>
// kernel: gaussian_policy_forward.1
$region0: #{gaussian_policy_forward.1}
  #allocation0 [shape = 'u32[]', space=smem, size = 0x4, offset = 0x4, fixed_abs, tag = 'smem constant byte address 0x4 - core index']
  #allocation1 [shape = 'u32[144,128]{1,0:T(1,128)}', space=vmem, size = 0x12000, scoped, tag = 'internal scratch']
  %s0 = inlined_call_operand.vmem [shape: bf16[8,32], index: 0, kind: input, shape index: {}]
  %s1 = inlined_call_operand.hbm [shape: bf16[32,256], index: 1, kind: input, shape index: {}]
  %s2 = inlined_call_operand.vmem [shape: f32[1,256], index: 2, kind: input, shape index: {}]
  %s3 = inlined_call_operand.hbm [shape: bf16[256,256], index: 3, kind: input, shape index: {}]
  %s4 = inlined_call_operand.vmem [shape: f32[1,256], index: 4, kind: input, shape index: {}]
  %s5 = inlined_call_operand.hbm [shape: bf16[256,128], index: 5, kind: input, shape index: {}]
  %s6 = inlined_call_operand.vmem [shape: f32[1,128], index: 6, kind: input, shape index: {}]
  %s7 = inlined_call_operand.vmem [shape: bf16[8,128], index: 7, kind: output, shape index: {}]
  %s8 = sld [smem:[#allocation0]]
  $region50: #{gaussian_policy_forward.1} parent=0
    _
  %s10 = ssub.s32 1, %s8
  %s11 = scalar_select 0, %s10, %s8
  $region1: #{gaussian_policy_forward.1} parent=0
    #allocation2 [shape = 'u8[16384]{0}', space=vmem, size = 0x4000, scoped, tag = 'input window, operand 1, single buffered']
    #allocation3 [shape = 's32[1]{0}', space=sflag, size = 0x4, scoped, tag = 'scoped memory for gaussian_policy_forward.1']
    #allocation4 [shape = 'u8[131072]{0}', space=vmem, size = 0x20000, scoped, tag = 'input window, operand 3, single buffered']
    #allocation5 [shape = 's32[1]{0}', space=sflag, size = 0x4, scoped, tag = 'scoped memory for gaussian_policy_forward.1']
    #allocation6 [shape = 'u8[65536]{0}', space=vmem, size = 0x10000, scoped, tag = 'input window, operand 5, single buffered']
    %12 = vsyncpa [#allocation3], 0
    %13 = vsyncpa [#allocation5], 0
    // Predicated region
    $region2: #{gaussian_policy_forward.1} parent=1 // pred_check
      _
    $region3: #{gaussian_policy_forward.1} parent=1 // pred_check_branch
      %15 = sbr.rel (0) target = $region5
    $region4: #{gaussian_policy_forward.1} parent=1 // pred_region
      _
    $region5: #{gaussian_policy_forward.1} parent=1 // pred_fallthru
      _
    // Predicated region
    $region6: #{gaussian_policy_forward.1} parent=1 // pred_check
      _
    $region7: #{gaussian_policy_forward.1} parent=1 // pred_check_branch
      %17 = sbr.rel (0) target = $region9
    $region8: #{gaussian_policy_forward.1} parent=1 // pred_region
      %s19 = ssub.s32 512, 512
      %20 = vsyncadd [#allocation3], %s19
      %s21 = sshll.u32 [#allocation2], 4
      %s22 = int_to_ptr.vmem [resolvable:$true] %s21
      %27 = dma.hbm_to_vmem [thread:$0]  %s1, 512, %s22, [#allocation3], 128, 128, 8
    $region9: #{gaussian_policy_forward.1} parent=1 // pred_fallthru
      _
    // Predicated region
    $region10: #{gaussian_policy_forward.1} parent=1 // pred_check
      _
    $region11: #{gaussian_policy_forward.1} parent=1 // pred_check_branch
      %29 = sbr.rel (0) target = $region13
    $region12: #{gaussian_policy_forward.1} parent=1 // pred_region
      _
    $region13: #{gaussian_policy_forward.1} parent=1 // pred_fallthru
      _
    // Predicated region
    $region14: #{gaussian_policy_forward.1} parent=1 // pred_check
      _
    $region15: #{gaussian_policy_forward.1} parent=1 // pred_check_branch
      %31 = sbr.rel (0) target = $region17
    $region16: #{gaussian_policy_forward.1} parent=1 // pred_region
      %s33 = ssub.s32 4096, 4096
      %34 = vsyncadd [#allocation5], %s33
      %s35 = sshll.u32 [#allocation4], 4
      %s36 = int_to_ptr.vmem [resolvable:$true] %s35
      %41 = dma.hbm_to_vmem [thread:$0]  %s3, 4096, %s36, [#allocation5], 128, 128, 8
    $region17: #{gaussian_policy_forward.1} parent=1 // pred_fallthru
      _
    // Predicated region
    $region18: #{gaussian_policy_forward.1} parent=1 // pred_check
      _
    $region19: #{gaussian_policy_forward.1} parent=1 // pred_check_branch
      %43 = sbr.rel (0) target = $region21
    $region20: #{gaussian_policy_forward.1} parent=1 // pred_region
      _
    $region21: #{gaussian_policy_forward.1} parent=1 // pred_fallthru
      _
    // Predicated region
    $region22: #{gaussian_policy_forward.1} parent=1 // pred_check
      _
    $region23: #{gaussian_policy_forward.1} parent=1 // pred_check_branch
      %45 = sbr.rel (0) target = $region25
    $region24: #{gaussian_policy_forward.1} parent=1 // pred_region
      %s47 = ssub.s32 2048, 2048
      %48 = vsyncadd [#allocation5], %s47
      %s49 = sshll.u32 [#allocation6], 4
      %s50 = int_to_ptr.vmem [resolvable:$true] %s49
      %55 = dma.hbm_to_vmem [thread:$0]  %s5, 2048, %s50, [#allocation5], 64, 64, 4
    $region25: #{gaussian_policy_forward.1} parent=1 // pred_fallthru
      _
    // Predicated region
    $region26: #{gaussian_policy_forward.1} parent=1 // pred_check
      _
    $region27: #{gaussian_policy_forward.1} parent=1 // pred_check_branch
      %57 = sbr.rel (0) target = $region29
    $region28: #{gaussian_policy_forward.1} parent=1 // pred_region
      _
    $region29: #{gaussian_policy_forward.1} parent=1 // pred_fallthru
      _
    // Predicated region
    $region30: #{gaussian_policy_forward.1} parent=1 // pred_check
      _
    $region31: #{gaussian_policy_forward.1} parent=1 // pred_check_branch
      %59 = sbr.rel (0) target = $region33
    $region32: #{gaussian_policy_forward.1} parent=1 // pred_region
      %60 = dma.done [#allocation3], 512
    $region33: #{gaussian_policy_forward.1} parent=1 // pred_fallthru
      _
    // Predicated region
    $region34: #{gaussian_policy_forward.1} parent=1 // pred_check
      _
    $region35: #{gaussian_policy_forward.1} parent=1 // pred_check_branch
      %62 = sbr.rel (0) target = $region37
    $region36: #{gaussian_policy_forward.1} parent=1 // pred_region
      %63 = dma.done [#allocation5], 4096
    $region37: #{gaussian_policy_forward.1} parent=1 // pred_fallthru
      _
    // Predicated region
    $region38: #{gaussian_policy_forward.1} parent=1 // pred_check
      _
    $region39: #{gaussian_policy_forward.1} parent=1 // pred_check_branch
      %65 = sbr.rel (0) target = $region41
    $region40: #{gaussian_policy_forward.1} parent=1 // pred_region
      %66 = dma.done [#allocation5], 2048
    $region41: #{gaussian_policy_forward.1} parent=1 // pred_fallthru
      _
    %v68 = vld [vmem:[%s0] sm:$0xf]
    %v69 = vld [vmem:[#allocation2] sm:$0xff]
    %v70 = vld [vmem:[#allocation2 + $0x8] sm:$0xff]
    %v71 = vld [vmem:[#allocation2 + $0x10] sm:$0xff]
    %v72 = vld [vmem:[#allocation2 + $0x18] sm:$0xff]
    %v73 = vld [vmem:[%s2] sm:$0x3]
    %v75 = vlaneseq
    %v76 = vshrl.u32 %v75, 7
    %v77 = vsub.s32 0, %v76
    %v78 = vrot.slane %v73, %v77
    %v79 = vlaneseq
    %v80 = vshrl.u32 %v79, 7
    %v81 = vsub.s32 1, %v80
    %v82 = vrot.slane %v73, %v81
    %v89 = vunpack.c.l.b16 %v69
    %v90 = vunpack.c.h.b16 %v69
    %v91 = vunpack.c.l.b16 %v70
    %v92 = vunpack.c.h.b16 %v70
    %v93 = vunpack.c.l.b16 %v71
    %v94 = vunpack.c.h.b16 %v71
    %v95 = vunpack.c.l.b16 %v72
    %v96 = vunpack.c.h.b16 %v72
    %v97 = vpack.c.b16 %v91, %v89
    %v98 = vpack.c.b16 %v92, %v90
    %v99 = vpack.c.b16 %v95, %v93
    %v100 = vpack.c.b16 %v96, %v94
    %vm105 = vcmask 261120
    %v107 = vsel %vm105, %v68, 0
    %109 = vmatprep.subr.bf16.mxu0 %v98
    %110 = vmatpush1.bf16.msra.mxu0 %v97
    %111 = vmatprep.subr.bf16.mxu0 %v100
    %112 = vmatpush1.bf16.msra.mxu0 %v99
    %113 = vmatprep.subr.bf16.mxu0 0
    %114 = vmatpush1.bf16.msra.mxu0 0
    %115 = vmatprep.subr.bf16.mxu0 0
    %116 = vmatpush1.bf16.msra.mxu0 0
    %117 = vmatprep.subr.bf16.mxu0 0
    %118 = vmatpush1.bf16.msra.mxu0 0
    %119 = vmatprep.subr.bf16.mxu0 0
    %120 = vmatpush1.bf16.msra.mxu0 0
    %121 = vmatprep.subr.bf16.mxu0 0
    %122 = vmatpush1.bf16.msra.mxu0 0
    %123 = vmatprep.subr.bf16.mxu0 0
    %124 = vmatpush1.bf16.msra.mxu0 0
    %125 = vmatprep.subr.bf16.mxu0 0
    %126 = vmatpush1.bf16.msra.mxu0 0
    %127 = vmatprep.subr.bf16.mxu0 0
    %128 = vmatpush1.bf16.msra.mxu0 0
    %129 = vmatprep.subr.bf16.mxu0 0
    %130 = vmatpush1.bf16.msra.mxu0 0
    %131 = vmatprep.subr.bf16.mxu0 0
    %132 = vmatpush1.bf16.msra.mxu0 0
    %133 = vmatprep.subr.bf16.mxu0 0
    %134 = vmatpush1.bf16.msra.mxu0 0
    %135 = vmatprep.subr.bf16.mxu0 0
    %136 = vmatpush1.bf16.msra.mxu0 0
    %137 = vmatprep.subr.bf16.mxu0 0
    %138 = vmatpush1.bf16.msra.mxu0 0
    %139 = vmatprep.subr.bf16.mxu0 0
    %140 = vmatpush1.bf16.msra.mxu0 0
    %141 = vmatprep.mubr.bf16.mxu0 0
    %142 = vmatmul.mubr.bf16.gmra.mrb[0].mxu0 %v107
    %v143 = vpop.f32.mrb[0].mxu0
    %v144 = vadd.f32 %v78, %v143
    %v145 = vpop.f32.mrb[0].mxu0
    %v146 = vadd.f32 %v82, %v145
    %v147 = vpop.f32.mrb[0].mxu0
    %v148 = vpop.f32.mrb[0].mxu0
    %149 = vdwg.mxu0
    %v150 = vmax.f32 %v144, 0.0
    %v151 = vmax.f32 %v146, 0.0
    %v152 = vpack.c.bf16 %v150, %v150
    %v153 = vpack.c.bf16 %v151, %v151
    %v154 = vld [vmem:[#allocation4] sm:$0xff]
    %v155 = vld [vmem:[#allocation4 + $0x8] sm:$0xff]
    %v156 = vld [vmem:[#allocation4 + $0x10] sm:$0xff]
    %v157 = vld [vmem:[#allocation4 + $0x18] sm:$0xff]
    %v158 = vld [vmem:[#allocation4 + $0x20] sm:$0xff]
    %v159 = vld [vmem:[#allocation4 + $0x28] sm:$0xff]
    %v160 = vld [vmem:[#allocation4 + $0x30] sm:$0xff]
    %v161 = vld [vmem:[#allocation4 + $0x38] sm:$0xff]
    %v162 = vld [vmem:[#allocation4 + $0x40] sm:$0xff]
    %v163 = vld [vmem:[#allocation4 + $0x48] sm:$0xff]
    %v164 = vld [vmem:[#allocation4 + $0x50] sm:$0xff]
    %v165 = vld [vmem:[#allocation4 + $0x58] sm:$0xff]
    %v166 = vld [vmem:[#allocation4 + $0x60] sm:$0xff]
    %v167 = vld [vmem:[#allocation4 + $0x68] sm:$0xff]
    %v168 = vld [vmem:[#allocation4 + $0x70] sm:$0xff]
    %v169 = vld [vmem:[#allocation4 + $0x78] sm:$0xff]
    %v170 = vld [vmem:[#allocation4 + $0x80] sm:$0xff]
    %v171 = vld [vmem:[#allocation4 + $0x88] sm:$0xff]
    %v172 = vld [vmem:[#allocation4 + $0x90] sm:$0xff]
    %v173 = vld [vmem:[#allocation4 + $0x98] sm:$0xff]
    %v174 = vld [vmem:[#allocation4 + $0xa0] sm:$0xff]
    %v175 = vld [vmem:[#allocation4 + $0xa8] sm:$0xff]
    %v176 = vld [vmem:[#allocation4 + $0xb0] sm:$0xff]
    %v177 = vld [vmem:[#allocation4 + $0xb8] sm:$0xff]
    %v178 = vld [vmem:[#allocation4 + $0xc0] sm:$0xff]
    %v179 = vld [vmem:[#allocation4 + $0xc8] sm:$0xff]
    %v180 = vld [vmem:[#allocation4 + $0xd0] sm:$0xff]
    %v181 = vld [vmem:[#allocation4 + $0xd8] sm:$0xff]
    %v182 = vld [vmem:[#allocation4 + $0xe0] sm:$0xff]
    %v183 = vld [vmem:[#allocation4 + $0xe8] sm:$0xff]
    %v184 = vld [vmem:[#allocation4 + $0xf0] sm:$0xff]
    %v185 = vld [vmem:[#allocation4 + $0xf8] sm:$0xff]
    %v186 = vld [vmem:[%s4] sm:$0x3]
    %v188 = vlaneseq
    %v189 = vshrl.u32 %v188, 7
    %v190 = vsub.s32 0, %v189
    %v191 = vrot.slane %v186, %v190
    %v192 = vlaneseq
    %v193 = vshrl.u32 %v192, 7
    %v194 = vsub.s32 1, %v193
    %v195 = vrot.slane %v186, %v194
    %v230 = vunpack.c.l.b16 %v154
    %v231 = vunpack.c.h.b16 %v154
    %v232 = vunpack.c.l.b16 %v155
    %v233 = vunpack.c.h.b16 %v155
    %v234 = vunpack.c.l.b16 %v156
    %v235 = vunpack.c.h.b16 %v156
    %v236 = vunpack.c.l.b16 %v157
    %v237 = vunpack.c.h.b16 %v157
    %v238 = vunpack.c.l.b16 %v158
    %v239 = vunpack.c.h.b16 %v158
    %v240 = vunpack.c.l.b16 %v159
    %v241 = vunpack.c.h.b16 %v159
    %v242 = vunpack.c.l.b16 %v160
    %v243 = vunpack.c.h.b16 %v160
    %v244 = vunpack.c.l.b16 %v161
    %v245 = vunpack.c.h.b16 %v161
    %v246 = vunpack.c.l.b16 %v162
    %v247 = vunpack.c.h.b16 %v162
    %v248 = vunpack.c.l.b16 %v163
    %v249 = vunpack.c.h.b16 %v163
    %v250 = vunpack.c.l.b16 %v164
    %v251 = vunpack.c.h.b16 %v164
    %v252 = vunpack.c.l.b16 %v165
    %v253 = vunpack.c.h.b16 %v165
    %v254 = vunpack.c.l.b16 %v166
    %v255 = vunpack.c.h.b16 %v166
    %v256 = vunpack.c.l.b16 %v167
    %v257 = vunpack.c.h.b16 %v167
    %v258 = vunpack.c.l.b16 %v168
    %v259 = vunpack.c.h.b16 %v168
    %v260 = vunpack.c.l.b16 %v169
    %v261 = vunpack.c.h.b16 %v169
    %v262 = vunpack.c.l.b16 %v170
    %v263 = vunpack.c.h.b16 %v170
    %v264 = vunpack.c.l.b16 %v171
    %v265 = vunpack.c.h.b16 %v171
    %v266 = vunpack.c.l.b16 %v172
    %v267 = vunpack.c.h.b16 %v172
    %v268 = vunpack.c.l.b16 %v173
    %v269 = vunpack.c.h.b16 %v173
    %v270 = vunpack.c.l.b16 %v174
    %v271 = vunpack.c.h.b16 %v174
    %v272 = vunpack.c.l.b16 %v175
    %v273 = vunpack.c.h.b16 %v175
    %v274 = vunpack.c.l.b16 %v176
    %v275 = vunpack.c.h.b16 %v176
    %v276 = vunpack.c.l.b16 %v177
    %v277 = vunpack.c.h.b16 %v177
    %v278 = vunpack.c.l.b16 %v178
    %v279 = vunpack.c.h.b16 %v178
    %v280 = vunpack.c.l.b16 %v179
    %v281 = vunpack.c.h.b16 %v179
    %v282 = vunpack.c.l.b16 %v180
    %v283 = vunpack.c.h.b16 %v180
    %v284 = vunpack.c.l.b16 %v181
    %v285 = vunpack.c.h.b16 %v181
    %v286 = vunpack.c.l.b16 %v182
    %v287 = vunpack.c.h.b16 %v182
    %v288 = vunpack.c.l.b16 %v183
    %v289 = vunpack.c.h.b16 %v183
    %v290 = vunpack.c.l.b16 %v184
    %v291 = vunpack.c.h.b16 %v184
    %v292 = vunpack.c.l.b16 %v185
    %v293 = vunpack.c.h.b16 %v185
    %v294 = vpack.c.b16 %v232, %v230
    %v295 = vpack.c.b16 %v233, %v231
    %v296 = vpack.c.b16 %v236, %v234
    %v297 = vpack.c.b16 %v237, %v235
    %v298 = vpack.c.b16 %v240, %v238
    %v299 = vpack.c.b16 %v241, %v239
    %v300 = vpack.c.b16 %v244, %v242
    %v301 = vpack.c.b16 %v245, %v243
    %v302 = vpack.c.b16 %v248, %v246
    %v303 = vpack.c.b16 %v249, %v247
    %v304 = vpack.c.b16 %v252, %v250
    %v305 = vpack.c.b16 %v253, %v251
    %v306 = vpack.c.b16 %v256, %v254
    %v307 = vpack.c.b16 %v257, %v255
    %v308 = vpack.c.b16 %v260, %v258
    %v309 = vpack.c.b16 %v261, %v259
    %v310 = vpack.c.b16 %v264, %v262
    %v311 = vpack.c.b16 %v265, %v263
    %v312 = vpack.c.b16 %v268, %v266
    %v313 = vpack.c.b16 %v269, %v267
    %v314 = vpack.c.b16 %v272, %v270
    %v315 = vpack.c.b16 %v273, %v271
    %v316 = vpack.c.b16 %v276, %v274
    %v317 = vpack.c.b16 %v277, %v275
    %v318 = vpack.c.b16 %v280, %v278
    %v319 = vpack.c.b16 %v281, %v279
    %v320 = vpack.c.b16 %v284, %v282
    %v321 = vpack.c.b16 %v285, %v283
    %v322 = vpack.c.b16 %v288, %v286
    %v323 = vpack.c.b16 %v289, %v287
    %v324 = vpack.c.b16 %v292, %v290
    %v325 = vpack.c.b16 %v293, %v291
    %358 = vmatprep.subr.bf16.mxu0 %v295
    %359 = vmatpush1.bf16.msra.mxu0 %v294
    %360 = vmatprep.subr.bf16.mxu0 %v297
    %361 = vmatpush1.bf16.msra.mxu0 %v296
    %362 = vmatprep.subr.bf16.mxu0 %v299
    %363 = vmatpush1.bf16.msra.mxu0 %v298
    %364 = vmatprep.subr.bf16.mxu0 %v301
    %365 = vmatpush1.bf16.msra.mxu0 %v300
    %366 = vmatprep.subr.bf16.mxu0 %v303
    %367 = vmatpush1.bf16.msra.mxu0 %v302
    %368 = vmatprep.subr.bf16.mxu0 %v305
    %369 = vmatpush1.bf16.msra.mxu0 %v304
    %370 = vmatprep.subr.bf16.mxu0 %v307
    %371 = vmatpush1.bf16.msra.mxu0 %v306
    %372 = vmatprep.subr.bf16.mxu0 %v309
    %373 = vmatpush1.bf16.msra.mxu0 %v308
    %374 = vmatprep.subr.bf16.mxu0 %v311
    %375 = vmatpush1.bf16.msra.mxu0 %v310
    %376 = vmatprep.subr.bf16.mxu0 %v313
    %377 = vmatpush1.bf16.msra.mxu0 %v312
    %378 = vmatprep.subr.bf16.mxu0 %v315
    %379 = vmatpush1.bf16.msra.mxu0 %v314
    %380 = vmatprep.subr.bf16.mxu0 %v317
    %381 = vmatpush1.bf16.msra.mxu0 %v316
    %382 = vmatprep.subr.bf16.mxu0 %v319
    %383 = vmatpush1.bf16.msra.mxu0 %v318
    %384 = vmatprep.subr.bf16.mxu0 %v321
    %385 = vmatpush1.bf16.msra.mxu0 %v320
    %386 = vmatprep.subr.bf16.mxu0 %v323
    %387 = vmatpush1.bf16.msra.mxu0 %v322
    %388 = vmatprep.subr.bf16.mxu0 %v325
    %389 = vmatpush1.bf16.msra.mxu0 %v324
    %390 = vmatprep.mubr.bf16.mxu0 %v153
    %391 = vmatmul.mubr.bf16.gmra.mrb[0].mxu0 %v152
    %v392 = vpop.f32.mrb[0].mxu0
    %v393 = vadd.f32 %v191, %v392
    %v394 = vpop.f32.mrb[0].mxu0
    %v395 = vadd.f32 %v195, %v394
    %v396 = vpop.f32.mrb[0].mxu0
    %v397 = vpop.f32.mrb[0].mxu0
    %398 = vdwg.mxu0
    %v399 = vmax.f32 %v393, 0.0
    %v400 = vmax.f32 %v395, 0.0
    %v401 = vpack.c.bf16 %v399, %v399
    %v402 = vpack.c.bf16 %v400, %v400
    %v403 = vld [vmem:[#allocation6] sm:$0xf]
    %v404 = vld [vmem:[#allocation6 + $0x4] sm:$0xf]
    %v405 = vld [vmem:[#allocation6 + $0x8] sm:$0xf]
    %v406 = vld [vmem:[#allocation6 + $0xc] sm:$0xf]
    %v407 = vld [vmem:[#allocation6 + $0x10] sm:$0xf]
    %v408 = vld [vmem:[#allocation6 + $0x14] sm:$0xf]
    %v409 = vld [vmem:[#allocation6 + $0x18] sm:$0xf]
    %v410 = vld [vmem:[#allocation6 + $0x1c] sm:$0xf]
    %v411 = vld [vmem:[#allocation6 + $0x20] sm:$0xf]
    %v412 = vld [vmem:[#allocation6 + $0x24] sm:$0xf]
    %v413 = vld [vmem:[#allocation6 + $0x28] sm:$0xf]
    %v414 = vld [vmem:[#allocation6 + $0x2c] sm:$0xf]
    %v415 = vld [vmem:[#allocation6 + $0x30] sm:$0xf]
    %v416 = vld [vmem:[#allocation6 + $0x34] sm:$0xf]
    %v417 = vld [vmem:[#allocation6 + $0x38] sm:$0xf]
    %v418 = vld [vmem:[#allocation6 + $0x3c] sm:$0xf]
    %v419 = vld [vmem:[#allocation6 + $0x40] sm:$0xf]
    %v420 = vld [vmem:[#allocation6 + $0x44] sm:$0xf]
    %v421 = vld [vmem:[#allocation6 + $0x48] sm:$0xf]
    %v422 = vld [vmem:[#allocation6 + $0x4c] sm:$0xf]
    %v423 = vld [vmem:[#allocation6 + $0x50] sm:$0xf]
    %v424 = vld [vmem:[#allocation6 + $0x54] sm:$0xf]
    %v425 = vld [vmem:[#allocation6 + $0x58] sm:$0xf]
    %v426 = vld [vmem:[#allocation6 + $0x5c] sm:$0xf]
    %v427 = vld [vmem:[#allocation6 + $0x60] sm:$0xf]
    %v428 = vld [vmem:[#allocation6 + $0x64] sm:$0xf]
    %v429 = vld [vmem:[#allocation6 + $0x68] sm:$0xf]
    %v430 = vld [vmem:[#allocation6 + $0x6c] sm:$0xf]
    %v431 = vld [vmem:[#allocation6 + $0x70] sm:$0xf]
    %v432 = vld [vmem:[#allocation6 + $0x74] sm:$0xf]
    %v433 = vld [vmem:[#allocation6 + $0x78] sm:$0xf]
    %v434 = vld [vmem:[#allocation6 + $0x7c] sm:$0xf]
    %v435 = vld [vmem:[%s6] sm:$0x1]
    %v437 = vlaneseq
    %v438 = vshrl.u32 %v437, 7
    %v439 = vsub.s32 0, %v438
    %v440 = vrot.slane %v435, %v439
    %v474 = vunpack.c.l.b16 %v403
    %v475 = vunpack.c.l.b16 %v404
    %v476 = vunpack.c.l.b16 %v405
    %v477 = vunpack.c.l.b16 %v406
    %v478 = vunpack.c.l.b16 %v407
    %v479 = vunpack.c.l.b16 %v408
    %v480 = vunpack.c.l.b16 %v409
    %v481 = vunpack.c.l.b16 %v410
    %v482 = vunpack.c.l.b16 %v411
    %v483 = vunpack.c.l.b16 %v412
    %v484 = vunpack.c.l.b16 %v413
    %v485 = vunpack.c.l.b16 %v414
    %v486 = vunpack.c.l.b16 %v415
    %v487 = vunpack.c.l.b16 %v416
    %v488 = vunpack.c.l.b16 %v417
    %v489 = vunpack.c.l.b16 %v418
    %v490 = vunpack.c.l.b16 %v419
    %v491 = vunpack.c.l.b16 %v420
    %v492 = vunpack.c.l.b16 %v421
    %v493 = vunpack.c.l.b16 %v422
    %v494 = vunpack.c.l.b16 %v423
    %v495 = vunpack.c.l.b16 %v424
    %v496 = vunpack.c.l.b16 %v425
    %v497 = vunpack.c.l.b16 %v426
    %v498 = vunpack.c.l.b16 %v427
    %v499 = vunpack.c.l.b16 %v428
    %v500 = vunpack.c.l.b16 %v429
    %v501 = vunpack.c.l.b16 %v430
    %v502 = vunpack.c.l.b16 %v431
    %v503 = vunpack.c.l.b16 %v432
    %v504 = vunpack.c.l.b16 %v433
    %v505 = vunpack.c.l.b16 %v434
    %v506 = vpack.c.b16 %v475, %v474
    %v507 = vpack.c.b16 %v477, %v476
    %v508 = vpack.c.b16 %v479, %v478
    %v509 = vpack.c.b16 %v481, %v480
    %v510 = vpack.c.b16 %v483, %v482
    %v511 = vpack.c.b16 %v485, %v484
    %v512 = vpack.c.b16 %v487, %v486
    %v513 = vpack.c.b16 %v489, %v488
    %v514 = vpack.c.b16 %v491, %v490
    %v515 = vpack.c.b16 %v493, %v492
    %v516 = vpack.c.b16 %v495, %v494
    %v517 = vpack.c.b16 %v497, %v496
    %v518 = vpack.c.b16 %v499, %v498
    %v519 = vpack.c.b16 %v501, %v500
    %v520 = vpack.c.b16 %v503, %v502
    %v521 = vpack.c.b16 %v505, %v504
    %538 = vmatprep.subr.bf16.mxu0 0
    %539 = vmatpush1.bf16.msra.mxu0 %v506
    %540 = vmatprep.subr.bf16.mxu0 0
    %541 = vmatpush1.bf16.msra.mxu0 %v507
    %542 = vmatprep.subr.bf16.mxu0 0
    %543 = vmatpush1.bf16.msra.mxu0 %v508
    %544 = vmatprep.subr.bf16.mxu0 0
    %545 = vmatpush1.bf16.msra.mxu0 %v509
    %546 = vmatprep.subr.bf16.mxu0 0
    %547 = vmatpush1.bf16.msra.mxu0 %v510
    %548 = vmatprep.subr.bf16.mxu0 0
    %549 = vmatpush1.bf16.msra.mxu0 %v511
    %550 = vmatprep.subr.bf16.mxu0 0
    %551 = vmatpush1.bf16.msra.mxu0 %v512
    %552 = vmatprep.subr.bf16.mxu0 0
    %553 = vmatpush1.bf16.msra.mxu0 %v513
    %554 = vmatprep.subr.bf16.mxu0 0
    %555 = vmatpush1.bf16.msra.mxu0 %v514
    %556 = vmatprep.subr.bf16.mxu0 0
    %557 = vmatpush1.bf16.msra.mxu0 %v515
    %558 = vmatprep.subr.bf16.mxu0 0
    %559 = vmatpush1.bf16.msra.mxu0 %v516
    %560 = vmatprep.subr.bf16.mxu0 0
    %561 = vmatpush1.bf16.msra.mxu0 %v517
    %562 = vmatprep.subr.bf16.mxu0 0
    %563 = vmatpush1.bf16.msra.mxu0 %v518
    %564 = vmatprep.subr.bf16.mxu0 0
    %565 = vmatpush1.bf16.msra.mxu0 %v519
    %566 = vmatprep.subr.bf16.mxu0 0
    %567 = vmatpush1.bf16.msra.mxu0 %v520
    %568 = vmatprep.subr.bf16.mxu0 0
    %569 = vmatpush1.bf16.msra.mxu0 %v521
    %570 = vmatprep.mubr.bf16.mxu0 %v402
    %571 = vmatmul.mubr.bf16.gmra.mrb[0].mxu0 %v401
    %v572 = vpop.f32.mrb[0].mxu0
    %v573 = vadd.f32 %v440, %v572
    %v574 = vpop.f32.mrb[0].mxu0
    %v575 = vpop.f32.mrb[0].mxu0
    %v576 = vpop.f32.mrb[0].mxu0
    %577 = vdwg.mxu0
    %v578 = vlaneseq
    %v579 = vand.u32 %v578, 127
    %v580 = vmax.f32 %v573, -20.0
    %v581 = vmin.f32 %v580, 2.0
    %vm582 = vcmp.ge.s32.totalorder %v579, 8
    %v583 = vsel %vm582, %v581, %v573
    %v584 = vpack.c.bf16 %v583, %v583
    %585 = vst [vmem:[%s7] sm:$0xf] %v584
    // Predicated region
    $region42: #{gaussian_policy_forward.1} parent=1 // pred_check
      _
    $region43: #{gaussian_policy_forward.1} parent=1 // pred_check_branch
      %587 = sbr.rel (0) target = $region45
    $region44: #{gaussian_policy_forward.1} parent=1 // pred_region
      _
    $region45: #{gaussian_policy_forward.1} parent=1 // pred_fallthru
      _
    // Predicated region
    $region46: #{gaussian_policy_forward.1} parent=1 // pred_check
      _
    $region47: #{gaussian_policy_forward.1} parent=1 // pred_check_branch
      %589 = sbr.rel (0) target = $region49
    $region48: #{gaussian_policy_forward.1} parent=1 // pred_region
      _
    $region49: #{gaussian_policy_forward.1} parent=1 // pred_fallthru
      _
    %590 = vsyncpa [#allocation3], 1
    %591 = vsyncpa [#allocation5], 1

</llo_original>
